<compile_context>
chip_gen: v7x
topology: tpu7x:2x2x1
jax: 0.10.0
libtpu: 0.0.40
codegen_flags: <defaults>
</compile_context>

<pallas_src>
import functools
import math

import jax
import jax.numpy as jnp
from jax.experimental import pallas as pl
from jax.experimental.pallas import tpu as pltpu


def _round_up(x, m):
    return ((x + m - 1) // m) * m


def _styled_conv1d_kernel(style_ref, mod_wT_ref, mod_b_ref, w_flat_ref, w_sq_ref,
                          xa_ref, xh_ref, o_ref, wmod_ref, *,
                          K, dil, halo, TL, eps, mxu_dtype):
    # style_ref : (1, 1, S)    this batch's style vector
    # mod_wT_ref: (S, IC)      EqualLinear weight^T, pre-scaled by mod_scale*conv_scale
    # mod_b_ref : (1, IC)      EqualLinear bias, pre-scaled by lr_mul*conv_scale
    # w_flat_ref: (OC, K*IC)   base conv weight, w_flat[o, k*IC+i] = w[o, i, k]
    # w_sq_ref  : (OC, IC)     sum_k w[o, i, k]^2  (for demodulation)
    # xa_ref    : (1, IC, TL)  input tile t (left-padded coordinates)
    # xh_ref    : (1, IC, HB)  halo block starting right after tile t
    # o_ref     : (1, OC, TL)  output tile
    # wmod_ref  : (OC, K*IC)   scratch: modulated + demodulated weight (per batch)

    # ---- per-batch work: build the modulated weight once (t == 0) and reuse it
    # ---- for every L tile of this batch (grid axis 1 is "arbitrary" => sequential).
    @pl.when(pl.program_id(1) == 0)
    def _():
        s = style_ref[0]                                               # (1, S)
        # conv_scale and the EqualLinear scaling are folded into mod_wT / mod_b,
        # so this is directly cmod[i] = conv_scale * modulation(style)[i].
        cmod = jnp.dot(s, mod_wT_ref[...],
                       preferred_element_type=jnp.float32) + mod_b_ref[...]   # (1, IC)
        # demod[o] = rsqrt(sum_{i,k} (cmod[i] * w[o,i,k])^2 + eps)
        dsum = jnp.sum(w_sq_ref[...] * (cmod * cmod), axis=1, keepdims=True)  # (OC, 1)
        demod = jax.lax.rsqrt(dsum + eps)                              # (OC, 1)
        cmod_k = jnp.concatenate([cmod] * K, axis=1)                   # (1, K*IC)
        wmod_ref[...] = (w_flat_ref[...] * cmod_k * demod).astype(wmod_ref.dtype)

    # ---- per-tile work: im2col the K shifted views into one deep-contraction
    # ---- operand and run a single MXU matmul (contraction depth K*IC).
    xa = xa_ref[0]                                                     # (IC, TL)
    if halo > 0:
        xw = jnp.concatenate([xa, xh_ref[0][:, :halo]], axis=1)        # (IC, TL+halo)
    else:
        xw = xa
    x_col = jnp.concatenate([xw[:, k * dil:k * dil + TL] for k in range(K)],
                            axis=0)                                    # (K*IC, TL)
    if mxu_dtype is not None:
        x_col = x_col.astype(mxu_dtype)
    out = jnp.dot(wmod_ref[...], x_col, preferred_element_type=jnp.float32)  # (OC, TL)
    o_ref[0] = out.astype(o_ref.dtype)


def styled_conv1d(inputs, style, conv_weight, mod_weight, mod_bias, *,
                  kernel_size, dilation, lr_mul=1.0, eps=1e-8,
                  tile_l=1024, mxu_dtype=None,
                  vmem_budget_bytes=40 * 1024 * 1024):
    """inputs: (B, IC, L) f32, style: (B, S) f32.
    conv_weight: (1, OC, IC, K), mod_weight: (IC, S), mod_bias: (IC,)."""
    B, IC, L = inputs.shape
    _, S = style.shape
    _, OC, _, K = conv_weight.shape
    assert K == kernel_size

    conv_scale = 1.0 / math.sqrt(IC * K)
    mod_scale = 1.0 / math.sqrt(S) * lr_mul
    pad = (K - 1) // 2 * dilation
    halo = dilation * (K - 1)
    L_out = L + 2 * pad - halo                  # PyTorch conv1d output length

    # ---- tile sizes: lane-dense output tiles (multiple of 128); the halo view
    # ---- uses the smallest 128-multiple block that covers the dilated halo.
    HB = _round_up(max(halo, 1), 128)
    TL = _round_up(max(min(int(tile_l), _round_up(L_out, 128)), HB), HB)

    def est_vmem(tl):
        per_step = 2 * (IC * tl + IC * HB + OC * tl) * 4      # double-buffered blocks
        consts = 2 * (S * IC + IC + OC * K * IC + OC * IC + S) * 4
        scratch = OC * K * IC * 4
        temps = (K * IC * tl + OC * tl) * 4                   # im2col + matmul result
        return per_step + consts + scratch + temps

    # Shrink the L tile until the estimate fits the (v7x-safe) VMEM budget.
    while TL > HB and est_vmem(TL) > vmem_budget_bytes:
        TL = _round_up(max(TL // 2, HB), HB)

    nT = pl.cdiv(L_out, TL)
    L_out_p = nT * TL
    Lxp = nT * TL + HB                          # halo block (t+1) always in-bounds

    # ---- host-side layout prep (tiny, one-off).
    # TODO(synk): the jnp.pad still materializes one extra padded copy of x in
    # HBM; per-tile halo DMA (pl.ANY + make_async_copy) or element-offset
    # blocks would remove that read+write of x for HBM-bound shapes.
    x_pad = jnp.pad(inputs, ((0, 0), (0, 0), (pad, Lxp - L - pad)))    # (B, IC, Lxp)
    style_r = style.reshape(B, 1, S)
    # Fold EqualLinear scale, lr_mul AND conv_scale into the modulation params.
    mod_wT = jnp.transpose(mod_weight, (1, 0)) * (mod_scale * conv_scale)   # (S, IC)
    mod_b = (mod_bias * (lr_mul * conv_scale)).reshape(1, IC)               # (1, IC)
    # w_flat[o, k*IC + i] = conv_weight[0, o, i, k]  (matches the im2col rows)
    w_flat = jnp.transpose(conv_weight[0], (0, 2, 1)).reshape(OC, K * IC)
    w_sq = jnp.sum(conv_weight[0] * conv_weight[0], axis=2)            # (OC, IC)

    kernel = functools.partial(
        _styled_conv1d_kernel,
        K=K, dil=dilation, halo=halo, TL=TL, eps=eps, mxu_dtype=mxu_dtype)

    hb_per_tile = TL // HB
    wmod_dtype = jnp.float32 if mxu_dtype is None else mxu_dtype

    out = pl.pallas_call(
        kernel,
        out_shape=jax.ShapeDtypeStruct((B, OC, L_out_p), inputs.dtype),
        grid_spec=pltpu.PrefetchScalarGridSpec(
            num_scalar_prefetch=0,
            grid=(B, nT),
            in_specs=[
                pl.BlockSpec((1, 1, S), lambda b, t: (b, 0, 0)),       # style
                # Grid-invariant operands: constant index maps => fetched once.
                # TODO(synk): pipeline_mode=pl.Buffered(1) would also drop their
                # unused second pipeline buffer and free VMEM on v7x.
                pl.BlockSpec((S, IC), lambda b, t: (0, 0)),            # mod W^T
                pl.BlockSpec((1, IC), lambda b, t: (0, 0)),            # mod bias
                pl.BlockSpec((OC, K * IC), lambda b, t: (0, 0)),       # conv W (flat)
                pl.BlockSpec((OC, IC), lambda b, t: (0, 0)),           # sum_k W^2
                pl.BlockSpec((1, IC, TL), lambda b, t: (b, 0, t)),     # x tile
                pl.BlockSpec((1, IC, HB),
                             lambda b, t: (b, 0, (t + 1) * hb_per_tile)),  # halo
            ],
            out_specs=pl.BlockSpec((1, OC, TL), lambda b, t: (b, 0, t)),
            scratch_shapes=[pltpu.VMEM((OC, K * IC), wmod_dtype)],
        ),
        compiler_params=pltpu.CompilerParams(
            # Batch axis shards across TensorCores (v7x megacore); the L-tile
            # axis stays "arbitrary" so the t==0 weight build runs sequentially
            # before the tiles that consume the scratch.
            dimension_semantics=("parallel", "arbitrary"),
            vmem_limit_bytes=48 * 1024 * 1024),
    )(style_r, mod_wT, mod_b, w_flat, w_sq, x_pad, x_pad)

    return out[:, :, :L_out]


def styled_conv1d_ref(inputs, style, conv_weight, mod_weight, mod_bias, *,
                      kernel_size, dilation, lr_mul=1.0, eps=1e-8):
    """Plain-JAX reference matching the PyTorch forward."""
    B, IC, L = inputs.shape
    _, S = style.shape
    _, OC, _, K = conv_weight.shape
    conv_scale = 1.0 / math.sqrt(IC * kernel_size)
    mod_scale = 1.0 / math.sqrt(S) * lr_mul
    pad = (kernel_size - 1) // 2 * dilation

    mod = style @ (mod_weight * mod_scale).T + mod_bias * lr_mul        # (B, IC)
    w = conv_scale * conv_weight * mod[:, None, :, None]                # (B, OC, IC, K)
    demod = jax.lax.rsqrt(jnp.sum(w * w, axis=(2, 3)) + eps)            # (B, OC)
    w = w * demod[:, :, None, None]

    x_pad = jnp.pad(inputs, ((0, 0), (0, 0), (pad, pad)))
    Lp = x_pad.shape[-1]
    L_out = Lp - dilation * (K - 1)
    out = jnp.zeros((B, OC, L_out), inputs.dtype)
    for k in range(K):
        out = out + jnp.einsum('boi,bil->bol', w[:, :, :, k],
                               x_pad[:, :, k * dilation: k * dilation + L_out])
    return out


if __name__ == "__main__":
    # Small shapes consistent with the module's forward.
    B, IC, OC, S, L = 2, 4, 8, 8, 16

    key = jax.random.PRNGKey(0)
    k1, k2, k3, k4 = jax.random.split(key, 4)

    conv_weight = jax.random.normal(k1, (1, OC, IC, 3), jnp.float32)   # randn(1,OC,IC,K)
    mod_weight = jax.random.normal(k2, (IC, S), jnp.float32)           # randn(IC, S) / lr_mul(=1)
    mod_bias = jnp.ones((IC,), jnp.float32)                            # bias_init = 1
    inputs = jax.random.normal(k3, (B, IC, L), jnp.float32)
    style = jax.random.normal(k4, (B, S), jnp.float32)

    for (K, dilation) in [(3, 1), (3, 2)]:
        out = styled_conv1d(inputs, style, conv_weight, mod_weight, mod_bias,
                            kernel_size=K, dilation=dilation)
        out = jax.block_until_ready(out)

        ref = styled_conv1d_ref(inputs, style, conv_weight, mod_weight, mod_bias,
                                kernel_size=K, dilation=dilation)
        ref = jax.block_until_ready(ref)

        assert out.shape == ref.shape, (out.shape, ref.shape)
        assert jnp.allclose(out, ref, atol=1e-4, rtol=1e-4), \
            float(jnp.max(jnp.abs(out - ref)))

    print("KERNEL_OK")
</pallas_src>

<mosaic_0001>
module attributes {stable_mosaic.version = 11 : i64} {
  func.func @_styled_conv1d_kernel(%arg0: i32, %arg1: i32, %arg2: memref<1x1x8xf32, #tpu.memory_space<vmem>>, %arg3: memref<8x4xf32, #tpu.memory_space<vmem>>, %arg4: memref<1x4xf32, #tpu.memory_space<vmem>>, %arg5: memref<8x12xf32, #tpu.memory_space<vmem>>, %arg6: memref<8x4xf32, #tpu.memory_space<vmem>>, %arg7: memref<1x4x128xf32, #tpu.memory_space<vmem>>, %arg8: memref<1x4x128xf32, #tpu.memory_space<vmem>>, %arg9: memref<1x8x128xf32, #tpu.memory_space<vmem>>, %arg10: memref<8x12xf32, #tpu.memory_space<vmem>>) attributes {dimension_semantics = [#tpu.dimension_semantics<parallel>, #tpu.dimension_semantics<arbitrary>], iteration_bounds = array<i64: 2, 1>, scalar_prefetch = 0 : i64, scratch_operands = 1 : i64, tpu.core_type = #tpu.core_type<tc>, window_params = [{transform_indices = @transform_0, window_bounds = array<i64: 1, 1, 8>}, {pipeline_mode = #tpu.pipeline_mode<synchronous>, transform_indices = @transform_1, window_bounds = array<i64: 8, 4>}, {pipeline_mode = #tpu.pipeline_mode<synchronous>, transform_indices = @transform_2, window_bounds = array<i64: 1, 4>}, {pipeline_mode = #tpu.pipeline_mode<synchronous>, transform_indices = @transform_3, window_bounds = array<i64: 8, 12>}, {pipeline_mode = #tpu.pipeline_mode<synchronous>, transform_indices = @transform_4, window_bounds = array<i64: 8, 4>}, {transform_indices = @transform_5, window_bounds = array<i64: 1, 4, 128>}, {transform_indices = @transform_6, window_bounds = array<i64: 1, 4, 128>}, {transform_indices = @transform_7, window_bounds = array<i64: 1, 8, 128>}]} {
    %c0_i32 = arith.constant 0 : i32
    %0 = arith.cmpi eq, %arg1, %c0_i32 : i32
    %1 = arith.extui %0 : i1 to i32
    %c0_i32_0 = arith.constant 0 : i32
    %2 = arith.cmpi ne, %1, %c0_i32_0 : i32
    scf.if %2 {
      %c0_11 = arith.constant 0 : index
      %c0_12 = arith.constant 0 : index
      %c0_13 = arith.constant 0 : index
      %18 = vector.load %arg2[%c0_11, %c0_12, %c0_13] : memref<1x1x8xf32, #tpu.memory_space<vmem>>, vector<1x1x8xf32>
      %19 = vector.shape_cast %18 : vector<1x1x8xf32> to vector<1x8xf32>
      %c0_14 = arith.constant 0 : index
      %c0_15 = arith.constant 0 : index
      %20 = vector.load %arg3[%c0_14, %c0_15] : memref<8x4xf32, #tpu.memory_space<vmem>>, vector<8x4xf32>
      %cst_16 = arith.constant dense<0.000000e+00> : vector<1x4xf32>
      %21 = tpu.matmul %19, %20, %cst_16 {dimension_numbers = #tpu.dot_dimension_numbers<[1], [0], [0], [1], [0, 0, 1, 1], [], []>} : vector<1x8xf32>, vector<8x4xf32>, vector<1x4xf32> -> vector<1x4xf32>
      %c0_17 = arith.constant 0 : index
      %c0_18 = arith.constant 0 : index
      %22 = vector.load %arg4[%c0_17, %c0_18] : memref<1x4xf32, #tpu.memory_space<vmem>>, vector<1x4xf32>
      %23 = arith.addf %21, %22 : vector<1x4xf32>
      %c0_19 = arith.constant 0 : index
      %c0_20 = arith.constant 0 : index
      %24 = vector.load %arg6[%c0_19, %c0_20] : memref<8x4xf32, #tpu.memory_space<vmem>>, vector<8x4xf32>
      %25 = arith.mulf %23, %23 : vector<1x4xf32>
      %26 = vector.broadcast %25 : vector<1x4xf32> to vector<8x4xf32>
      %27 = arith.mulf %24, %26 : vector<8x4xf32>
      %cst_21 = arith.constant dense<0.000000e+00> : vector<8xf32>
      %28 = vector.multi_reduction <add>, %27, %cst_21 [1] : vector<8x4xf32> to vector<8xf32>
      %29 = vector.shape_cast %28 : vector<8xf32> to vector<8x1xf32>
      %cst_22 = arith.constant 9.99999993E-9 : f32
      %30 = vector.broadcast %cst_22 : f32 to vector<8x1xf32>
      %31 = arith.addf %29, %30 : vector<8x1xf32>
      %32 = math.rsqrt %31 : vector<8x1xf32>
      %33 = tpu.concatenate %23, %23, %23 in 1 : vector<1x4xf32>, vector<1x4xf32>, vector<1x4xf32> -> vector<1x12xf32>
      %c0_23 = arith.constant 0 : index
      %c0_24 = arith.constant 0 : index
      %34 = vector.load %arg5[%c0_23, %c0_24] : memref<8x12xf32, #tpu.memory_space<vmem>>, vector<8x12xf32>
      %35 = vector.broadcast %33 : vector<1x12xf32> to vector<8x12xf32>
      %36 = arith.mulf %34, %35 : vector<8x12xf32>
      %37 = vector.broadcast %32 : vector<8x1xf32> to vector<8x12xf32>
      %38 = arith.mulf %36, %37 : vector<8x12xf32>
      %c0_25 = arith.constant 0 : index
      %c0_26 = arith.constant 0 : index
      %39 = vector.load %arg10[%c0_25, %c0_26] : memref<8x12xf32, #tpu.memory_space<vmem>>, vector<8x12xf32>
      tpu.vector_store %arg10[%c0_25, %c0_26], %38 {strides = array<i32>} : memref<8x12xf32, #tpu.memory_space<vmem>>, vector<8x12xf32>,
    } else {
    }
    %c0 = arith.constant 0 : index
    %c0_1 = arith.constant 0 : index
    %c0_2 = arith.constant 0 : index
    %3 = vector.load %arg7[%c0, %c0_1, %c0_2] : memref<1x4x128xf32, #tpu.memory_space<vmem>>, vector<1x4x128xf32>
    %4 = vector.shape_cast %3 : vector<1x4x128xf32> to vector<4x128xf32>
    %c0_3 = arith.constant 0 : index
    %c0_4 = arith.constant 0 : index
    %c0_5 = arith.constant 0 : index
    %5 = vector.load %arg8[%c0_3, %c0_4, %c0_5] : memref<1x4x128xf32, #tpu.memory_space<vmem>>, vector<1x4x128xf32>
    %6 = vector.shape_cast %5 : vector<1x4x128xf32> to vector<4x128xf32>
    %7 = vector.extract_strided_slice %6 {offsets = [0, 0], sizes = [4, 2], strides = [1, 1]} : vector<4x128xf32> to vector<4x2xf32>
    %8 = tpu.concatenate %4, %7 in 1 : vector<4x128xf32>, vector<4x2xf32> -> vector<4x130xf32>
    %9 = vector.extract_strided_slice %8 {offsets = [0, 0], sizes = [4, 128], strides = [1, 1]} : vector<4x130xf32> to vector<4x128xf32>
    %10 = vector.extract_strided_slice %8 {offsets = [0, 1], sizes = [4, 128], strides = [1, 1]} : vector<4x130xf32> to vector<4x128xf32>
    %11 = vector.extract_strided_slice %8 {offsets = [0, 2], sizes = [4, 128], strides = [1, 1]} : vector<4x130xf32> to vector<4x128xf32>
    %12 = tpu.concatenate %9, %10, %11 in 0 : vector<4x128xf32>, vector<4x128xf32>, vector<4x128xf32> -> vector<12x128xf32>
    %c0_6 = arith.constant 0 : index
    %c0_7 = arith.constant 0 : index
    %13 = vector.load %arg10[%c0_6, %c0_7] : memref<8x12xf32, #tpu.memory_space<vmem>>, vector<8x12xf32>
    %cst = arith.constant dense<0.000000e+00> : vector<8x128xf32>
    %14 = tpu.matmul %13, %12, %cst {dimension_numbers = #tpu.dot_dimension_numbers<[1], [0], [0], [1], [0, 0, 1, 1], [], []>} : vector<8x12xf32>, vector<12x128xf32>, vector<8x128xf32> -> vector<8x128xf32>
    %c0_8 = arith.constant 0 : index
    %c0_9 = arith.constant 0 : index
    %c0_10 = arith.constant 0 : index
    %15 = vector.load %arg9[%c0_8, %c0_9, %c0_10] : memref<1x8x128xf32, #tpu.memory_space<vmem>>, vector<1x8x128xf32>
    %16 = vector.shape_cast %15 : vector<1x8x128xf32> to vector<8x128xf32>
    %17 = vector.shape_cast %14 : vector<8x128xf32> to vector<1x8x128xf32>
    tpu.vector_store %arg9[%c0_8, %c0_9, %c0_10], %17 {strides = array<i32>} : memref<1x8x128xf32, #tpu.memory_space<vmem>>, vector<1x8x128xf32>,
    return
  }
  func.func @transform_0(%arg0: i32, %arg1: i32) -> (i32, i32, i32) {
    %c0_i32 = arith.constant 0 : i32
    %c0_i32_0 = arith.constant 0 : i32
    %c0_i32_1 = arith.constant 0 : i32
    return %arg0, %c0_i32, %c0_i32_0 : i32, i32, i32
  }
  func.func @transform_1(%arg0: i32, %arg1: i32) -> (i32, i32) {
    %c0_i32 = arith.constant 0 : i32
    %c0_i32_0 = arith.constant 0 : i32
    %c0_i32_1 = arith.constant 0 : i32
    return %c0_i32, %c0_i32_0 : i32, i32
  }
  func.func @transform_2(%arg0: i32, %arg1: i32) -> (i32, i32) {
    %c0_i32 = arith.constant 0 : i32
    %c0_i32_0 = arith.constant 0 : i32
    %c0_i32_1 = arith.constant 0 : i32
    return %c0_i32, %c0_i32_0 : i32, i32
  }
  func.func @transform_3(%arg0: i32, %arg1: i32) -> (i32, i32) {
    %c0_i32 = arith.constant 0 : i32
    %c0_i32_0 = arith.constant 0 : i32
    %c0_i32_1 = arith.constant 0 : i32
    return %c0_i32, %c0_i32_0 : i32, i32
  }
  func.func @transform_4(%arg0: i32, %arg1: i32) -> (i32, i32) {
    %c0_i32 = arith.constant 0 : i32
    %c0_i32_0 = arith.constant 0 : i32
    %c0_i32_1 = arith.constant 0 : i32
    return %c0_i32, %c0_i32_0 : i32, i32
  }
  func.func @transform_5(%arg0: i32, %arg1: i32) -> (i32, i32, i32) {
    %c0_i32 = arith.constant 0 : i32
    %c0_i32_0 = arith.constant 0 : i32
    return %arg0, %c0_i32, %arg1 : i32, i32, i32
  }
  func.func @transform_6(%arg0: i32, %arg1: i32) -> (i32, i32, i32) {
    %c1_i32 = arith.constant 1 : i32
    %0 = arith.addi %arg1, %c1_i32 : i32
    %c1_i32_0 = arith.constant 1 : i32
    %1 = arith.muli %0, %c1_i32_0 : i32
    %c0_i32 = arith.constant 0 : i32
    %c0_i32_1 = arith.constant 0 : i32
    return %arg0, %c0_i32, %1 : i32, i32, i32
  }
  func.func @transform_7(%arg0: i32, %arg1: i32) -> (i32, i32, i32) {
    %c0_i32 = arith.constant 0 : i32
    %c0_i32_0 = arith.constant 0 : i32
    return %arg0, %c0_i32, %arg1 : i32, i32, i32
  }
}

</mosaic_0001>

<llo_original>
// kernel: tpu_custom_call.1
$region0: #{tpu_custom_call.1}
  #allocation0 [shape = 'u32[]', space=smem, size = 0x4, offset = 0x4, fixed_abs, tag = 'smem constant byte address 0x4 - core index']
  #allocation1 [shape = 'u32[144,128]{1,0:T(1,128)}', space=vmem, size = 0x12000, scoped, tag = 'internal scratch']
  #allocation2 [shape = 'f32[8,12]{1,0:T(8,128)}', space=vmem, size = 0x1000, scoped, tag = 'scratch operand']
  %s0 = inlined_call_operand.vmem [shape: f32[2,1,8], index: 0, kind: input, shape index: {}]
  %s1 = inlined_call_operand.vmem [shape: f32[8,4], index: 1, kind: input, shape index: {}]
  %s2 = inlined_call_operand.vmem [shape: f32[1,4], index: 2, kind: input, shape index: {}]
  %s3 = inlined_call_operand.hbm [shape: f32[8,12], index: 3, kind: input, shape index: {}]
  %s4 = inlined_call_operand.vmem [shape: f32[8,4], index: 4, kind: input, shape index: {}]
  %s5 = inlined_call_operand.vmem [shape: f32[2,4,256], index: 5, kind: input, shape index: {}]
  %s6 = inlined_call_operand.vmem [shape: f32[2,4,256], index: 6, kind: input, shape index: {}]
  %s7 = inlined_call_operand.hbm [shape: f32[2,8,128], index: 7, kind: output, shape index: {}]
  %s8 = sld [smem:[#allocation0]]
  $region69: #{tpu_custom_call.1} parent=0
    _
  %s10 = ssub.s32 1, %s8
  %s11 = scalar_select 0, %s10, %s8
  $region1: #{tpu_custom_call.1} parent=0
    #allocation3 [shape = 'u8[4096]{0}', space=vmem, size = 0x1000, scoped, tag = 'input window, operand 3, single buffered']
    #allocation4 [shape = 's32[2]{0}', space=sflag, size = 0x8, scoped, tag = 'scoped memory for tpu_custom_call.1']
    #allocation5 [shape = 's32[2]{0}', space=sflag, size = 0x8, scoped, tag = 'scoped memory for tpu_custom_call.1']
    #allocation6 [shape = 'u8[8192]{0}', space=vmem, size = 0x2000, scoped, tag = 'output window, operand 0']
    %12 = vsyncpa [#allocation4], 0
    %13 = vsyncpa [#allocation5], 0
    %s14 = scalar_lea.sflag [#allocation5], 1
    %15 = vsyncpa %s14, 0
    loop: start=0, step=1, limit=4
    $region2: #{tpu_custom_call.1} parent=1 // loop_pre_header
      _
    $region3: #{tpu_custom_call.1} parent=1 // loop_header
      %s17 = sphi 0, %s21
      %p18 = scmp.ge.s32.totalorder %s17, 4
      %s24 = sphi 0, %s36
      %s25 = sphi 0, %s32
      %s26 = sphi 0, %s24
      %s27 = sphi 0, %s25
      %s28 = sphi 0, %s26
      %s29 = sphi 0, %s27
      %s39 = sphi 0, %s41
      %s42 = sphi 0, %s39
      %s43 = sphi 0, %s42
      %s59 = sphi 0, %s43
      %s63 = sphi 0, %s63
      %s65 = sphi 0, %s63
      %s66 = sphi 0, %s65
      %s80 = sphi 0, %s66
      %s84 = sphi 0, %s84
      %s86 = sphi 0, %s84
      %s87 = sphi 0, %s86
      %s101 = sphi 0, %s87
      %s105 = sphi 0, %s105
      %s107 = sphi 0, %s105
      %s108 = sphi 0, %s107
      %s122 = sphi 0, %s108
      %s126 = sphi 0, %s126
      %s128 = sphi 0, %s126
      %s129 = sphi 0, %s128
      %s143 = sphi 0, %s129
      %s151 = sphi 0, %s153
      %s154 = sphi 0, %s151
      %s155 = sphi 0, %s154
      %s171 = sphi 0, %s155
      %s181 = sphi 0, %s183
      %s184 = sphi 0, %s181
      %s185 = sphi 0, %s184
      %s201 = sphi 0, %s185
      %s209 = sphi 0, %s211
      %s212 = sphi 0, %s209
      %s213 = sphi 0, %s212
      %s229 = sphi 0, %s213
    $region4: #{tpu_custom_call.1} parent=1 // loop_header_branch
      %20 = sbr.rel (%p18) target = $region8
    $region5: #{tpu_custom_call.1} parent=1 // loop_body
      %s22 = ssub.s32 %s17, 1
      %s23 = ssub.s32 %s17, 2
      %s30 = sadd.s32 1, %s25
      %p31 = scmp.ge.s32.totalorder %s30, 1
      %s32 = scalar_select %p31, 0, %s30
      %s33 = sadd.s32 1, %s24
      %s34 = scalar_select %p31, %s33, %s24
      %p35 = scmp.ge.s32.totalorder %s34, 2
      %s36 = scalar_select %p35, 0, %s34
      %s37 = ssub.s32 %s24, %s36
      %p38 = scmp.eq.s32.totalorder %s37, 0
      %s40 = sadd.s32 %s39, 1
      %s41 = scalar_select %p38, %s39, %s40
      %p44 = pneg %p38
      %p45 = scmp.eq.s32.totalorder %s17, 1
      %p46 = por %p44, %p45
      %p47 = scmp.ne.s32.totalorder %s39, %s42
      %p48 = scmp.eq.s32.totalorder %s17, 0
      %p49 = por %p47, %p48
      %p50 = scmp.ne.s32.totalorder %s39, %s42
      %p51 = scmp.eq.s32.totalorder %s22, 1
      %p52 = por %p50, %p51
      %p53 = scmp.ne.s32.totalorder %s42, %s43
      %p54 = scmp.eq.s32.totalorder %s22, 0
      %p55 = por %p53, %p54
      %p56 = scmp.ne.s32.totalorder %s42, %s43
      %p57 = scmp.eq.s32.totalorder %s23, 1
      %p58 = por %p56, %p57
      %p60 = scmp.ne.s32.totalorder %s43, %s59
      %p61 = scmp.eq.s32.totalorder %s23, 0
      %p62 = por %p60, %p61
      %s64 = sadd.s32 %s63, 1
      %p67 = scmp.eq.s32.totalorder %s17, 1
      %p68 = scmp.ne.s32.totalorder %s63, %s65
      %p69 = scmp.eq.s32.totalorder %s17, 0
      %p70 = por %p68, %p69
      %p71 = scmp.ne.s32.totalorder %s63, %s65
      %p72 = scmp.eq.s32.totalorder %s22, 1
      %p73 = por %p71, %p72
      %p74 = scmp.ne.s32.totalorder %s65, %s66
      %p75 = scmp.eq.s32.totalorder %s22, 0
      %p76 = por %p74, %p75
      %p77 = scmp.ne.s32.totalorder %s65, %s66
      %p78 = scmp.eq.s32.totalorder %s23, 1
      %p79 = por %p77, %p78
      %p81 = scmp.ne.s32.totalorder %s66, %s80
      %p82 = scmp.eq.s32.totalorder %s23, 0
      %p83 = por %p81, %p82
      %s85 = sadd.s32 %s84, 1
      %p88 = scmp.eq.s32.totalorder %s17, 1
      %p89 = scmp.ne.s32.totalorder %s84, %s86
      %p90 = scmp.eq.s32.totalorder %s17, 0
      %p91 = por %p89, %p90
      %p92 = scmp.ne.s32.totalorder %s84, %s86
      %p93 = scmp.eq.s32.totalorder %s22, 1
      %p94 = por %p92, %p93
      %p95 = scmp.ne.s32.totalorder %s86, %s87
      %p96 = scmp.eq.s32.totalorder %s22, 0
      %p97 = por %p95, %p96
      %p98 = scmp.ne.s32.totalorder %s86, %s87
      %p99 = scmp.eq.s32.totalorder %s23, 1
      %p100 = por %p98, %p99
      %p102 = scmp.ne.s32.totalorder %s87, %s101
      %p103 = scmp.eq.s32.totalorder %s23, 0
      %p104 = por %p102, %p103
      %s106 = sadd.s32 %s105, 1
      %p109 = scmp.eq.s32.totalorder %s17, 1
      %p110 = scmp.ne.s32.totalorder %s105, %s107
      %p111 = scmp.eq.s32.totalorder %s17, 0
      %p112 = por %p110, %p111
      %p113 = scmp.ne.s32.totalorder %s105, %s107
      %p114 = scmp.eq.s32.totalorder %s22, 1
      %p115 = por %p113, %p114
      %p116 = scmp.ne.s32.totalorder %s107, %s108
      %p117 = scmp.eq.s32.totalorder %s22, 0
      %p118 = por %p116, %p117
      %p119 = scmp.ne.s32.totalorder %s107, %s108
      %p120 = scmp.eq.s32.totalorder %s23, 1
      %p121 = por %p119, %p120
      %p123 = scmp.ne.s32.totalorder %s108, %s122
      %p124 = scmp.eq.s32.totalorder %s23, 0
      %p125 = por %p123, %p124
      %s127 = sadd.s32 %s126, 1
      %p130 = scmp.eq.s32.totalorder %s17, 1
      %p131 = scmp.ne.s32.totalorder %s126, %s128
      %p132 = scmp.eq.s32.totalorder %s17, 0
      %p133 = por %p131, %p132
      %p134 = scmp.ne.s32.totalorder %s126, %s128
      %p135 = scmp.eq.s32.totalorder %s22, 1
      %p136 = por %p134, %p135
      %p137 = scmp.ne.s32.totalorder %s128, %s129
      %p138 = scmp.eq.s32.totalorder %s22, 0
      %p139 = por %p137, %p138
      %p140 = scmp.ne.s32.totalorder %s128, %s129
      %p141 = scmp.eq.s32.totalorder %s23, 1
      %p142 = por %p140, %p141
      %p144 = scmp.ne.s32.totalorder %s129, %s143
      %p145 = scmp.eq.s32.totalorder %s23, 0
      %p146 = por %p144, %p145
      %s147 = ssub.s32 %s24, %s36
      %s148 = ssub.s32 %s25, %s32
      %s149 = sor.u32 %s147, %s148
      %p150 = scmp.eq.s32.totalorder %s149, 0
      %s152 = sadd.s32 %s151, 1
      %s153 = scalar_select %p150, %s151, %s152
      %p156 = pneg %p150
      %p157 = scmp.eq.s32.totalorder %s17, 1
      %p158 = por %p156, %p157
      %p159 = scmp.ne.s32.totalorder %s151, %s154
      %p160 = scmp.eq.s32.totalorder %s17, 0
      %p161 = por %p159, %p160
      %p162 = scmp.ne.s32.totalorder %s151, %s154
      %p163 = scmp.eq.s32.totalorder %s22, 1
      %p164 = por %p162, %p163
      %p165 = scmp.ne.s32.totalorder %s154, %s155
      %p166 = scmp.eq.s32.totalorder %s22, 0
      %p167 = por %p165, %p166
      %p168 = scmp.ne.s32.totalorder %s154, %s155
      %p169 = scmp.eq.s32.totalorder %s23, 1
      %p170 = por %p168, %p169
      %p172 = scmp.ne.s32.totalorder %s155, %s171
      %p173 = scmp.eq.s32.totalorder %s23, 0
      %p174 = por %p172, %p173
      %s175 = sadd.s32 %s25, 1
      %s176 = sadd.s32 %s32, 1
      %s177 = ssub.s32 %s24, %s36
      %s178 = ssub.s32 %s175, %s176
      %s179 = sor.u32 %s177, %s178
      %p180 = scmp.eq.s32.totalorder %s179, 0
      %s182 = sadd.s32 %s181, 1
      %s183 = scalar_select %p180, %s181, %s182
      %p186 = pneg %p180
      %p187 = scmp.eq.s32.totalorder %s17, 1
      %p188 = por %p186, %p187
      %p189 = scmp.ne.s32.totalorder %s181, %s184
      %p190 = scmp.eq.s32.totalorder %s17, 0
      %p191 = por %p189, %p190
      %p192 = scmp.ne.s32.totalorder %s181, %s184
      %p193 = scmp.eq.s32.totalorder %s22, 1
      %p194 = por %p192, %p193
      %p195 = scmp.ne.s32.totalorder %s184, %s185
      %p196 = scmp.eq.s32.totalorder %s22, 0
      %p197 = por %p195, %p196
      %p198 = scmp.ne.s32.totalorder %s184, %s185
      %p199 = scmp.eq.s32.totalorder %s23, 1
      %p200 = por %p198, %p199
      %p202 = scmp.ne.s32.totalorder %s185, %s201
      %p203 = scmp.eq.s32.totalorder %s23, 0
      %p204 = por %p202, %p203
      %s205 = ssub.s32 %s24, %s36
      %s206 = ssub.s32 %s25, %s32
      %s207 = sor.u32 %s205, %s206
      %p208 = scmp.eq.s32.totalorder %s207, 0
      %s210 = sadd.s32 %s209, 1
      %s211 = scalar_select %p208, %s209, %s210
      %p214 = pneg %p208
      %p215 = scmp.eq.s32.totalorder %s17, 1
      %p216 = por %p214, %p215
      %p217 = scmp.ne.s32.totalorder %s209, %s212
      %p218 = scmp.eq.s32.totalorder %s17, 0
      %p219 = por %p217, %p218
      %p220 = scmp.ne.s32.totalorder %s209, %s212
      %p221 = scmp.eq.s32.totalorder %s22, 1
      %p222 = por %p220, %p221
      %p223 = scmp.ne.s32.totalorder %s212, %s213
      %p224 = scmp.eq.s32.totalorder %s22, 0
      %p225 = por %p223, %p224
      %p226 = scmp.ne.s32.totalorder %s212, %s213
      %p227 = scmp.eq.s32.totalorder %s23, 1
      %p228 = por %p226, %p227
      %p230 = scmp.ne.s32.totalorder %s213, %s229
      %p231 = scmp.eq.s32.totalorder %s23, 0
      %p232 = por %p230, %p231
      %p233 = scmp.le.s32.totalorder 1, %s17
      %p234 = scmp.lt.s32.totalorder %s17, 3
      %p235 = pnand %p233, %p234
      %p236 = pneg %p235
      // Predicated region
      $region9: #{tpu_custom_call.1} parent=5 // pred_check
        _
      $region10: #{tpu_custom_call.1} parent=5 // pred_check_branch
        %238 = sbr.rel (%p235) target = $region12
      $region11: #{tpu_custom_call.1} parent=5 // pred_region
        %s239 = ssub.s32 %s17, 1
        // Predicated region
        $region13: #{tpu_custom_call.1} parent=11 // pred_check
          %p240 = pneg %p76
        $region14: #{tpu_custom_call.1} parent=11 // pred_check_branch
          %242 = sbr.rel (%p240) target = $region16
        $region15: #{tpu_custom_call.1} parent=11 // pred_region
          _
        $region16: #{tpu_custom_call.1} parent=11 // pred_fallthru
          _
        // Predicated region
        $region17: #{tpu_custom_call.1} parent=11 // pred_check
          %p243 = pneg %p97
        $region18: #{tpu_custom_call.1} parent=11 // pred_check_branch
          %245 = sbr.rel (%p243) target = $region20
        $region19: #{tpu_custom_call.1} parent=11 // pred_region
          _
        $region20: #{tpu_custom_call.1} parent=11 // pred_fallthru
          _
        // Predicated region
        $region21: #{tpu_custom_call.1} parent=11 // pred_check
          %p246 = pneg %p118
        $region22: #{tpu_custom_call.1} parent=11 // pred_check_branch
          %248 = sbr.rel (%p246) target = $region24
        $region23: #{tpu_custom_call.1} parent=11 // pred_region
          %s250 = ssub.s32 128, 128
          %251 = vsyncadd [#allocation4], %s250
          %s253 = sshll.u32 [#allocation3], 4
          %s254 = int_to_ptr.vmem [resolvable:$true] %s253
          %256 = dma.hbm_to_vmem [thread:$0]  %s3, 128, %s254, [#allocation4]
        $region24: #{tpu_custom_call.1} parent=11 // pred_fallthru
          _
        // Predicated region
        $region25: #{tpu_custom_call.1} parent=11 // pred_check
          %p257 = pneg %p139
        $region26: #{tpu_custom_call.1} parent=11 // pred_check_branch
          %259 = sbr.rel (%p257) target = $region28
        $region27: #{tpu_custom_call.1} parent=11 // pred_region
          _
        $region28: #{tpu_custom_call.1} parent=11 // pred_fallthru
          _
      $region12: #{tpu_custom_call.1} parent=5 // pred_fallthru
        _
      %p260 = scmp.lt.s32.totalorder %s17, 2
      // Predicated region
      $region29: #{tpu_custom_call.1} parent=5 // pred_check
        %p261 = pneg %p260
      $region30: #{tpu_custom_call.1} parent=5 // pred_check_branch
        %263 = sbr.rel (%p261) target = $region32
      $region31: #{tpu_custom_call.1} parent=5 // pred_region
        // Predicated region
        $region33: #{tpu_custom_call.1} parent=31 // pred_check
          %p264 = pneg %p49
        $region34: #{tpu_custom_call.1} parent=31 // pred_check_branch
          %266 = sbr.rel (%p264) target = $region36
        $region35: #{tpu_custom_call.1} parent=31 // pred_region
          %p267 = scmp.lt.s32.totalorder %s24, 1
          %s268 = scalar_select %p267, %s24, 1
          %s269 = scalar_lea.vmem %s0, %s268
        $region36: #{tpu_custom_call.1} parent=31 // pred_fallthru
          _
        // Predicated region
        $region37: #{tpu_custom_call.1} parent=31 // pred_check
          %p270 = pneg %p161
        $region38: #{tpu_custom_call.1} parent=31 // pred_check_branch
          %272 = sbr.rel (%p270) target = $region40
        $region39: #{tpu_custom_call.1} parent=31 // pred_region
          %p273 = scmp.lt.s32.totalorder %s24, 1
          %s274 = scalar_select %p273, %s24, 1
          %p275 = scmp.lt.s32.totalorder %s25, 1
          %s276 = scalar_select %p275, %s25, 1
          %s277 = smul.addr %s274, 2
          %s278 = sadd.s32 %s276, %s277
          %s279 = smul.addr %s278, 4
          %s280 = scalar_lea.vmem %s5, %s279
        $region40: #{tpu_custom_call.1} parent=31 // pred_fallthru
          _
        // Predicated region
        $region41: #{tpu_custom_call.1} parent=31 // pred_check
          %p281 = pneg %p191
        $region42: #{tpu_custom_call.1} parent=31 // pred_check_branch
          %283 = sbr.rel (%p281) target = $region44
        $region43: #{tpu_custom_call.1} parent=31 // pred_region
          %s284 = sadd.s32 %s25, 1
          %p285 = scmp.lt.s32.totalorder %s24, 1
          %s286 = scalar_select %p285, %s24, 1
          %p287 = scmp.lt.s32.totalorder %s284, 1
          %s288 = scalar_select %p287, %s284, 1
          %s289 = smul.addr %s286, 2
          %s290 = sadd.s32 %s288, %s289
          %s291 = smul.addr %s290, 4
          %s292 = scalar_lea.vmem %s6, %s291
          %s293 = sadd.s32 %s25, 1
        $region44: #{tpu_custom_call.1} parent=31 // pred_fallthru
          _
      $region32: #{tpu_custom_call.1} parent=5 // pred_fallthru
        _
      %p294 = scmp.le.s32.totalorder 1, %s17
      %p295 = scmp.lt.s32.totalorder %s17, 3
      %p296 = pnand %p294, %p295
      %p297 = pneg %p296
      // Predicated region
      $region45: #{tpu_custom_call.1} parent=5 // pred_check
        _
      $region46: #{tpu_custom_call.1} parent=5 // pred_check_branch
        %299 = sbr.rel (%p296) target = $region48
      $region47: #{tpu_custom_call.1} parent=5 // pred_region
        %s300 = ssub.s32 %s17, 1
        // Predicated region
        $region49: #{tpu_custom_call.1} parent=47 // pred_check
          %p301 = pneg %p118
        $region50: #{tpu_custom_call.1} parent=47 // pred_check_branch
          %303 = sbr.rel (%p301) target = $region52
        $region51: #{tpu_custom_call.1} parent=47 // pred_region
          %304 = dma.done [#allocation4], 128
        $region52: #{tpu_custom_call.1} parent=47 // pred_fallthru
          _
        %p305 = scmp.lt.s32.totalorder %s26, 1
        %s306 = scalar_select %p305, %s26, 1
        %s307 = scalar_lea.vmem %s0, %s306
        %p308 = pneg %p55
        %p309 = pneg %p52
        %p310 = pneg %p76
        %p311 = pneg %p73
        %p312 = pneg %p97
        %p313 = pneg %p94
        %p314 = pneg %p118
        %p315 = pneg %p115
        %p316 = pneg %p139
        %p317 = pneg %p136
        %p318 = scmp.lt.s32.totalorder %s26, 1
        %s319 = scalar_select %p318, %s26, 1
        %p320 = scmp.lt.s32.totalorder %s27, 1
        %s321 = scalar_select %p320, %s27, 1
        %s322 = smul.addr %s319, 2
        %s323 = sadd.s32 %s321, %s322
        %s324 = smul.addr %s323, 4
        %s325 = scalar_lea.vmem %s5, %s324
        %p326 = pneg %p167
        %p327 = pneg %p164
        %s328 = sadd.s32 %s27, 1
        %p329 = scmp.lt.s32.totalorder %s26, 1
        %s330 = scalar_select %p329, %s26, 1
        %p331 = scmp.lt.s32.totalorder %s328, 1
        %s332 = scalar_select %p331, %s328, 1
        %s333 = smul.addr %s330, 2
        %s334 = sadd.s32 %s332, %s333
        %s335 = smul.addr %s334, 4
        %s336 = scalar_lea.vmem %s6, %s335
        %p337 = pneg %p197
        %p338 = pneg %p194
        %p339 = pneg %p225
        %p340 = pneg %p222
        %s341 = sand.u32 %s212, 1
        %s342 = scalar_lea.sflag [#allocation5], %s341
        %s343 = sand.u32 %s212, 1
        %s344 = smul.addr %s343, 8
        %s345 = scalar_lea.vmem [#allocation6], %s344
        %p346 = scmp.lt.s32.totalorder %s26, 1
        %s347 = scalar_select %p346, %s26, 1
        %s348 = scalar_lea.vmem %s0, %s347
        %p349 = scmp.lt.s32.totalorder %s26, 1
        %s350 = scalar_select %p349, %s26, 1
        %p351 = scmp.lt.s32.totalorder %s27, 1
        %s352 = scalar_select %p351, %s27, 1
        %s353 = smul.addr %s350, 2
        %s354 = sadd.s32 %s352, %s353
        %s355 = smul.addr %s354, 4
        %s356 = scalar_lea.vmem %s5, %s355
        %s357 = sadd.s32 %s27, 1
        %p358 = scmp.lt.s32.totalorder %s26, 1
        %s359 = scalar_select %p358, %s26, 1
        %p360 = scmp.lt.s32.totalorder %s357, 1
        %s361 = scalar_select %p360, %s357, 1
        %s362 = smul.addr %s359, 2
        %s363 = sadd.s32 %s361, %s362
        %s364 = smul.addr %s363, 4
        %s365 = scalar_lea.vmem %s6, %s364
        %s366 = sadd.s32 %s27, 1
        %p367 = scmp.eq.s32.totalorder %s27, 0
        // Predicated region
        $region53: #{tpu_custom_call.1} parent=47 // pred_check
          %p368 = pneg %p367
        $region54: #{tpu_custom_call.1} parent=47 // pred_check_branch
          %370 = sbr.rel (%p368) target = $region56
        $region55: #{tpu_custom_call.1} parent=47 // pred_region
          %v371 = vld [vmem:[%s348] sm:$0x1]
          %v372 = vld [vmem:[%s1] sm:$0xff]
          %v373 = vld [vmem:[%s2] sm:$0x1]
          %vm374 = vcmask 64512
          %v376 = vsel %vm374, %v371, 0
          %378 = vmatprep.subr.mxu0 0.0
          %379 = vmatpush1.msra.mxu0 %v372
          %380 = vmatprep.subr.mxu0 0.0
          %381 = vmatpush1.msra.mxu0 0.0
          %382 = vmatprep.subr.mxu0 0.0
          %383 = vmatpush1.msra.mxu0 0.0
          %384 = vmatprep.subr.mxu0 0.0
          %385 = vmatpush1.msra.mxu0 0.0
          %386 = vmatprep.subr.mxu0 0.0
          %387 = vmatpush1.msra.mxu0 0.0
          %388 = vmatprep.subr.mxu0 0.0
          %389 = vmatpush1.msra.mxu0 0.0
          %390 = vmatprep.subr.mxu0 0.0
          %391 = vmatpush1.msra.mxu0 0.0
          %392 = vmatprep.subr.mxu0 0.0
          %393 = vmatpush1.msra.mxu0 0.0
          %394 = vmatprep.subr.mxu0 0.0
          %395 = vmatpush1.msra.mxu0 0.0
          %396 = vmatprep.subr.mxu0 0.0
          %397 = vmatpush1.msra.mxu0 0.0
          %398 = vmatprep.subr.mxu0 0.0
          %399 = vmatpush1.msra.mxu0 0.0
          %400 = vmatprep.subr.mxu0 0.0
          %401 = vmatpush1.msra.mxu0 0.0
          %402 = vmatprep.subr.mxu0 0.0
          %403 = vmatpush1.msra.mxu0 0.0
          %404 = vmatprep.subr.mxu0 0.0
          %405 = vmatpush1.msra.mxu0 0.0
          %406 = vmatprep.subr.mxu0 0.0
          %407 = vmatpush1.msra.mxu0 0.0
          %408 = vmatprep.subr.mxu0 0.0
          %409 = vmatpush1.msra.mxu0 0.0
          %410 = vmatprep.subr.mxu0 0.0
          %411 = vmatpush1.msra.mxu0 0.0
          %412 = vmatprep.subr.mxu0 0.0
          %413 = vmatpush1.msra.mxu0 0.0
          %414 = vmatprep.subr.mxu0 0.0
          %415 = vmatpush1.msra.mxu0 0.0
          %416 = vmatprep.subr.mxu0 0.0
          %417 = vmatpush1.msra.mxu0 0.0
          %418 = vmatprep.subr.mxu0 0.0
          %419 = vmatpush1.msra.mxu0 0.0
          %420 = vmatprep.subr.mxu0 0.0
          %421 = vmatpush1.msra.mxu0 0.0
          %422 = vmatprep.subr.mxu0 0.0
          %423 = vmatpush1.msra.mxu0 0.0
          %424 = vmatprep.subr.mxu0 0.0
          %425 = vmatpush1.msra.mxu0 0.0
          %426 = vmatprep.subr.mxu0 0.0
          %427 = vmatpush1.msra.mxu0 0.0
          %428 = vmatprep.subr.mxu0 0.0
          %429 = vmatpush1.msra.mxu0 0.0
          %430 = vmatprep.subr.mxu0 0.0
          %431 = vmatpush1.msra.mxu0 0.0
          %432 = vmatprep.subr.mxu0 0.0
          %433 = vmatpush1.msra.mxu0 0.0
          %434 = vmatprep.subr.mxu0 0.0
          %435 = vmatpush1.msra.mxu0 0.0
          %436 = vmatprep.subr.mxu0 0.0
          %437 = vmatpush1.msra.mxu0 0.0
          %438 = vmatprep.subr.mxu0 0.0
          %439 = vmatpush1.msra.mxu0 0.0
          %440 = vmatprep.subr.mxu0 0.0
          %441 = vmatpush1.msra.mxu0 0.0
          %442 = vmatprep.mubr.f32.mxu0 0.0
          %443 = vmatmul.mubr.f32.gmra.mrb[0].mxu0 %v376
          %v444 = vpop.f32.mrb[0].mxu0
          %v445 = vadd.f32 %v373, %v444
          %v446 = vpop.f32.mrb[0].mxu0
          %447 = vdwg.mxu0
          %v448 = vld [vmem:[%s4] sm:$0xff]
          %v449 = vmul.f32 %v445, %v445
          %v450 = vlaneseq
          %v451 = vshrl.u32 %v450, 7
          %v452 = vsub.s32 0, %v451
          %v453 = vrot.slane %v449, %v452
          %v454 = vmul.f32 %v448, %v453
          %vm455 = vcmask 31744
          %v456 = vsel %vm455, %v454, 0.0
          %457 = vadd.xlane.f32.xlu0 %v456
          %v458 = vpop.xlane.xlu0 %457
          %v459 = vadd.f32 %v458, 1e-08
          %v460 = vrsqrt.pop %v459
          %462 = vrot.lane.b32.xlu0 %v445, 4
          %v463 = vpop.permute.xlu0 %462
          %465 = vrot.lane.b32.xlu0 %v445, 8
          %v466 = vpop.permute.xlu0 %465
          %v468 = vsel %vm455, %v445, %v463
          %v469 = vsel %vm374, %v468, %v466
          %v470 = vld [vmem:[#allocation3] sm:$0xff]
          %v471 = vlaneseq
          %v472 = vshrl.u32 %v471, 7
          %v473 = vsub.s32 0, %v472
          %v474 = vrot.slane %v469, %v473
          %v475 = vmul.f32 %v470, %v474
          %v476 = vmul.f32 %v475, %v460
          %vm477 = vcmask 97280
          %478 = vst.msk [vmem:[#allocation2] sm:$0xff] %vm477, %v476
        $region56: #{tpu_custom_call.1} parent=47 // pred_fallthru
          _
        %v479 = vld [vmem:[%s356] sm:$0xf]
        %v480 = vld [vmem:[%s365] sm:$0xf]
        %v483 = vrot.slane %v479, 4
        %v484 = vrot.slane %v480, 4
        %485 = vrot.lane.b32.xlu0 %v483, 127
        %v486 = vpop.permute.xlu0 %485
        %487 = vrot.lane.b32.xlu0 %v484, 127
        %v488 = vpop.permute.xlu0 %487
        %vm489 = vcmask 1039360
        %v490 = vsel %vm489, %v486, %v488
        %492 = vrot.lane.b32.xlu0 %v479, 126
        %v493 = vpop.permute.xlu0 %492
        %494 = vrot.lane.b32.xlu0 %v480, 126
        %v495 = vpop.permute.xlu0 %494
        %vm496 = vcmask 1031168
        %v497 = vsel %vm496, %v493, %v495
        %vm498 = vcmask 1043456
        %v499 = vsel %vm498, %v479, %v490
        %v500 = vld [vmem:[#allocation2] sm:$0xff]
        %vm501 = vcmask 97280
        %v503 = vsel %vm501, %v500, 0
        %v505 = vsel %vm498, %v497, 0
        %507 = vmatprep.subr.mxu0 0.0
        %508 = vmatpush1.msra.mxu0 %v499
        %509 = vmatprep.subr.mxu0 0.0
        %510 = vmatpush1.msra.mxu0 %v505
        %511 = vmatprep.subr.mxu0 0.0
        %512 = vmatpush1.msra.mxu0 0.0
        %513 = vmatprep.subr.mxu0 0.0
        %514 = vmatpush1.msra.mxu0 0.0
        %515 = vmatprep.subr.mxu0 0.0
        %516 = vmatpush1.msra.mxu0 0.0
        %517 = vmatprep.subr.mxu0 0.0
        %518 = vmatpush1.msra.mxu0 0.0
        %519 = vmatprep.subr.mxu0 0.0
        %520 = vmatpush1.msra.mxu0 0.0
        %521 = vmatprep.subr.mxu0 0.0
        %522 = vmatpush1.msra.mxu0 0.0
        %523 = vmatprep.subr.mxu0 0.0
        %524 = vmatpush1.msra.mxu0 0.0
        %525 = vmatprep.subr.mxu0 0.0
        %526 = vmatpush1.msra.mxu0 0.0
        %527 = vmatprep.subr.mxu0 0.0
        %528 = vmatpush1.msra.mxu0 0.0
        %529 = vmatprep.subr.mxu0 0.0
        %530 = vmatpush1.msra.mxu0 0.0
        %531 = vmatprep.subr.mxu0 0.0
        %532 = vmatpush1.msra.mxu0 0.0
        %533 = vmatprep.subr.mxu0 0.0
        %534 = vmatpush1.msra.mxu0 0.0
        %535 = vmatprep.subr.mxu0 0.0
        %536 = vmatpush1.msra.mxu0 0.0
        %537 = vmatprep.subr.mxu0 0.0
        %538 = vmatpush1.msra.mxu0 0.0
        %539 = vmatprep.subr.mxu0 0.0
        %540 = vmatpush1.msra.mxu0 0.0
        %541 = vmatprep.subr.mxu0 0.0
        %542 = vmatpush1.msra.mxu0 0.0
        %543 = vmatprep.subr.mxu0 0.0
        %544 = vmatpush1.msra.mxu0 0.0
        %545 = vmatprep.subr.mxu0 0.0
        %546 = vmatpush1.msra.mxu0 0.0
        %547 = vmatprep.subr.mxu0 0.0
        %548 = vmatpush1.msra.mxu0 0.0
        %549 = vmatprep.subr.mxu0 0.0
        %550 = vmatpush1.msra.mxu0 0.0
        %551 = vmatprep.subr.mxu0 0.0
        %552 = vmatpush1.msra.mxu0 0.0
        %553 = vmatprep.subr.mxu0 0.0
        %554 = vmatpush1.msra.mxu0 0.0
        %555 = vmatprep.subr.mxu0 0.0
        %556 = vmatpush1.msra.mxu0 0.0
        %557 = vmatprep.subr.mxu0 0.0
        %558 = vmatpush1.msra.mxu0 0.0
        %559 = vmatprep.subr.mxu0 0.0
        %560 = vmatpush1.msra.mxu0 0.0
        %561 = vmatprep.subr.mxu0 0.0
        %562 = vmatpush1.msra.mxu0 0.0
        %563 = vmatprep.subr.mxu0 0.0
        %564 = vmatpush1.msra.mxu0 0.0
        %565 = vmatprep.subr.mxu0 0.0
        %566 = vmatpush1.msra.mxu0 0.0
        %567 = vmatprep.subr.mxu0 0.0
        %568 = vmatpush1.msra.mxu0 0.0
        %569 = vmatprep.subr.mxu0 0.0
        %570 = vmatpush1.msra.mxu0 0.0
        %571 = vmatprep.mubr.f32.mxu0 0.0
        %572 = vmatmul.mubr.f32.gmra.mrb[0].mxu0 %v503
        %v573 = vpop.f32.mrb[0].mxu0
        %v574 = vadd.f32 0.0, %v573
        %v575 = vpop.f32.mrb[0].mxu0
        %576 = vdwg.mxu0
        %577 = vst [vmem:[%s345] sm:$0xff] %v574
        %s578 = sand.u32 %s212, 1
        %s579 = scalar_lea.sflag [#allocation5], %s578
        %s580 = sand.u32 %s212, 1
        %s581 = smul.addr %s580, 8
        %s582 = scalar_lea.vmem [#allocation6], %s581
        // Predicated region
        $region57: #{tpu_custom_call.1} parent=47 // pred_check
          %p583 = pneg %p222
        $region58: #{tpu_custom_call.1} parent=47 // pred_check_branch
          %585 = sbr.rel (%p583) target = $region60
        $region59: #{tpu_custom_call.1} parent=47 // pred_region
          %s587 = ssub.s32 128, 128
          %588 = vsyncadd %s579, %s587
          %s589 = sadd.s32 %s27, %s26
          %s590 = smul.addr %s589, 128
          %s591 = scalar_lea.hbm %s7, %s590
          %s593 = sshll.u32 %s582, 4
          %s594 = int_to_ptr.vmem [resolvable:$true] %s593
          %596 = dma.vmem_to_hbm [thread:$0]  %s594, 128, %s591, %s579
        $region60: #{tpu_custom_call.1} parent=47 // pred_fallthru
          _
      $region48: #{tpu_custom_call.1} parent=5 // pred_fallthru
        _
      %p597 = scmp.le.s32.totalorder 2, %s17
      // Predicated region
      $region61: #{tpu_custom_call.1} parent=5 // pred_check
        %p598 = pneg %p597
      $region62: #{tpu_custom_call.1} parent=5 // pred_check_branch
        %600 = sbr.rel (%p598) target = $region64
      $region63: #{tpu_custom_call.1} parent=5 // pred_region
        %s601 = ssub.s32 %s17, 2
        // Predicated region
        $region65: #{tpu_custom_call.1} parent=63 // pred_check
          %p602 = pneg %p228
        $region66: #{tpu_custom_call.1} parent=63 // pred_check_branch
          %604 = sbr.rel (%p602) target = $region68
        $region67: #{tpu_custom_call.1} parent=63 // pred_region
          %s605 = sand.u32 %s213, 1
          %s606 = scalar_lea.sflag [#allocation5], %s605
          %s607 = sand.u32 %s213, 1
          %s608 = smul.addr %s607, 8
          %s609 = scalar_lea.vmem [#allocation6], %s608
          %610 = dma.done %s606, 128
        $region68: #{tpu_custom_call.1} parent=63 // pred_fallthru
          _
      $region64: #{tpu_custom_call.1} parent=5 // pred_fallthru
        _
    $region6: #{tpu_custom_call.1} parent=1 // loop_footer
      %s21 = sadd.s32 1, %s17
    $region7: #{tpu_custom_call.1} parent=1 // loop_footer_branch
      %16 = sbr.rel target = $region3
    $region8: #{tpu_custom_call.1} parent=1 // loop_exit
      _
    %611 = vsyncpa [#allocation4], 1
    %s612 = scalar_lea.sflag [#allocation4], 1
    %613 = vsyncpa %s612, 1
    %614 = vsyncpa [#allocation5], 1
    %s615 = scalar_lea.sflag [#allocation5], 1
    %616 = vsyncpa %s615, 1

</llo_original>
